<compile_context>
chip_gen: v5e
topology: v5e:2x2
jax: 0.10.0
libtpu: 0.0.40
codegen_flags: <defaults>
</compile_context>

<pallas_src>
import math

import jax
import jax.numpy as jnp
from jax.experimental import pallas as pl
from jax.experimental.pallas import tpu as pltpu


def _new_gelu(x):
    # 0.5 * x * (1 + tanh(sqrt(2/pi) * (x + 0.044715 * x^3)))
    c = math.sqrt(2.0 / math.pi)
    return 0.5 * x * (1.0 + jnp.tanh(c * (x + 0.044715 * x * x * x)))


def _ffn_kernel(x_ref, w1_ref, b1_ref, w2_ref, b2_ref, o_ref, acc_ref):
    # x_ref : (tm, H)      w1_ref: (H, tf)    b1_ref: (1, tf)
    # w2_ref: (tf, H)      b2_ref: (1, H)
    # o_ref : (tm, H)      acc_ref: (tm, H) f32 scratch
    f = pl.program_id(1)

    @pl.when(f == 0)
    def _init():
        acc_ref[...] = jnp.zeros_like(acc_ref)

    # Input-projection slice: (tm, H) @ (H, tf) on the MXU, f32 accumulation.
    h = jnp.dot(x_ref[...], w1_ref[...], preferred_element_type=jnp.float32)

    # Bias + NewGELU in f32, cast back to the weight dtype for the second dot.
    # Folded into one expression so only one (tm, tf) f32 intermediate is live.
    g = _new_gelu(h + b1_ref[...].astype(jnp.float32)).astype(w2_ref.dtype)

    # Output-projection slice: accumulate (tm, tf) @ (tf, H).
    acc_ref[...] += jnp.dot(g, w2_ref[...], preferred_element_type=jnp.float32)

    @pl.when(f == pl.num_programs(1) - 1)
    def _finalize():
        out = acc_ref[...] + b2_ref[...].astype(jnp.float32)
        o_ref[...] = out.astype(o_ref.dtype)


def _round_up(x, m):
    return ((x + m - 1) // m) * m


def _device_tuning():
    """Per-generation tile / VMEM defaults."""
    kind = ""
    try:
        kind = jax.devices()[0].device_kind.lower()
    except Exception:  # no devices visible at trace time; fall through
        pass
    if "v7" in kind:
        # 64 MiB physical VMEM per TC -> leave headroom; small tf funds big tm.
        return dict(tile_m=512, tile_f=256, vmem_limit=48 * 1024 * 1024,
                    is_v7x=True)
    if "v6" in kind:
        return dict(tile_m=1024, tile_f=512, vmem_limit=100 * 1024 * 1024,
                    is_v7x=False)
    if "v5" in kind:
        return dict(tile_m=384, tile_f=512, vmem_limit=100 * 1024 * 1024,
                    is_v7x=False)
    # Unknown generation: conservative.
    return dict(tile_m=512, tile_f=512, vmem_limit=64 * 1024 * 1024,
                is_v7x=False)


def feedforward_pallas(x, w1, b1, w2, b2, *, tile_m=None, tile_f=None,
                       compute_dtype=jnp.bfloat16, vmem_limit_bytes=None):
    """x: [B, S, H]; w1: [H, 4H]; b1: [4H]; w2: [4H, H]; b2: [H].

    Weights are stored as [in, out] (transpose of nn.Linear's [out, in]).
    Dropout is eval-mode identity.
    """
    B, S, H = x.shape
    F = w1.shape[1]
    M = B * S

    tune = _device_tuning()
    if tile_m is None:
        tile_m = tune["tile_m"]
    if tile_f is None:
        tile_f = tune["tile_f"]
    if vmem_limit_bytes is None:
        vmem_limit_bytes = tune["vmem_limit"]

    # Clamp tiles to the (padded) problem while keeping (8, 128) grain.
    tm = _round_up(min(tile_m, _round_up(M, 8)), 8)
    tf = _round_up(min(tile_f, _round_up(F, 128)), 128)

    # v7x megacore: ensure the "parallel" i axis has >= 2 blocks so both
    # TensorCores get work (v5e/v6e have a single TC, no change there).
    if tune["is_v7x"] and tm >= 16 and _round_up(M, tm) // tm < 2:
        tm = _round_up(pl.cdiv(M, 2), 8)

    M_pad = _round_up(M, tm)
    F_pad = _round_up(F, tf)

    x2 = x.reshape(M, H)
    if M_pad != M:
        x2 = jnp.pad(x2, ((0, M_pad - M), (0, 0)))
    if F_pad != F:
        # Zero padding along F is exact: padded hidden units contribute 0.
        w1 = jnp.pad(w1, ((0, 0), (0, F_pad - F)))
        b1 = jnp.pad(b1, ((0, F_pad - F),))
        w2 = jnp.pad(w2, ((0, F_pad - F), (0, 0)))

    # bf16 operands for the MXU; biases stay f32 (added in f32 in-kernel).
    x2c = x2.astype(compute_dtype)
    w1c = w1.astype(compute_dtype)
    w2c = w2.astype(compute_dtype)
    b1_2d = b1.reshape(1, F_pad).astype(jnp.float32)
    b2_2d = b2.reshape(1, H).astype(jnp.float32)

    grid = (M_pad // tm, F_pad // tf)

    in_bytes = jnp.dtype(compute_dtype).itemsize
    out_bytes = jnp.dtype(x.dtype).itemsize
    cost = pl.CostEstimate(
        flops=4 * M_pad * H * F_pad,                      # two matmuls
        transcendentals=M_pad * F_pad,                    # tanh per hidden elem
        bytes_accessed=int(
            M_pad * H * (in_bytes + out_bytes)            # x in, out
            + grid[0] * (w1c.size + w2c.size) * in_bytes  # weights re-streamed
            + (F_pad + H) * 4                             # biases
        ),
    )

    out2 = pl.pallas_call(
        _ffn_kernel,
        out_shape=jax.ShapeDtypeStruct((M_pad, H), x.dtype),
        grid_spec=pltpu.PrefetchScalarGridSpec(
            num_scalar_prefetch=0,
            grid=grid,
            in_specs=[
                # x row-tile: independent of f -> resident across inner loop.
                pl.BlockSpec((tm, H), lambda i, f: (i, 0)),
                # w1 slice over F: streams along the inner (reduction) axis.
                pl.BlockSpec((H, tf), lambda i, f: (0, f)),
                # b1 slice over F.
                pl.BlockSpec((1, tf), lambda i, f: (0, f)),
                # w2 slice over F.
                pl.BlockSpec((tf, H), lambda i, f: (f, 0)),
                # b2 full (only used in the finalize branch).
                pl.BlockSpec((1, H), lambda i, f: (0, 0)),
            ],
            out_specs=pl.BlockSpec((tm, H), lambda i, f: (i, 0)),
            scratch_shapes=[pltpu.VMEM((tm, H), jnp.float32)],
        ),
        compiler_params=pltpu.CompilerParams(
            dimension_semantics=("parallel", "arbitrary"),
            vmem_limit_bytes=vmem_limit_bytes,
        ),
        cost_estimate=cost,
    )(x2c, w1c, b1_2d, w2c, b2_2d)

    if M_pad != M:
        out2 = out2[:M]
    return out2.reshape(B, S, H)


def feedforward_ref(x, w1, b1, w2, b2, compute_dtype=jnp.bfloat16):
    """Reference mirroring the kernel's bf16 operand quantization."""
    xf = x.astype(compute_dtype).astype(jnp.float32)
    w1f = w1.astype(compute_dtype).astype(jnp.float32)
    w2f = w2.astype(compute_dtype).astype(jnp.float32)
    h = jnp.einsum("bsh,hf->bsf", xf, w1f,
                   precision=jax.lax.Precision.HIGHEST) + b1.astype(jnp.float32)
    g = _new_gelu(h).astype(compute_dtype).astype(jnp.float32)
    out = jnp.einsum("bsf,fh->bsh", g, w2f,
                     precision=jax.lax.Precision.HIGHEST) + b2.astype(jnp.float32)
    return out.astype(x.dtype)


if __name__ == "__main__":
    B, S, H = 2, 8, 32
    F = 4 * H  # 128

    key = jax.random.PRNGKey(0)
    kx, kw1, kb1, kw2, kb2 = jax.random.split(key, 5)

    x = jax.random.normal(kx, (B, S, H), dtype=jnp.float32)

    # nn.Linear default init: U(-1/sqrt(in), 1/sqrt(in)); stored here as [in, out]
    lim1 = 1.0 / math.sqrt(H)
    w1 = jax.random.uniform(kw1, (H, F), minval=-lim1, maxval=lim1, dtype=jnp.float32)
    b1 = jax.random.uniform(kb1, (F,), minval=-lim1, maxval=lim1, dtype=jnp.float32)
    lim2 = 1.0 / math.sqrt(F)
    w2 = jax.random.uniform(kw2, (F, H), minval=-lim2, maxval=lim2, dtype=jnp.float32)
    b2 = jax.random.uniform(kb2, (H,), minval=-lim2, maxval=lim2, dtype=jnp.float32)

    out = feedforward_pallas(x, w1, b1, w2, b2)
    out = jax.block_until_ready(out)

    ref = feedforward_ref(x, w1, b1, w2, b2)
    assert out.shape == (B, S, H)
    assert jnp.allclose(out, ref, atol=2e-3, rtol=2e-3), "mismatch vs reference"

    print("KERNEL_OK")
</pallas_src>

<mosaic_0001>
module attributes {stable_mosaic.version = 11 : i64} {
  func.func @_ffn_kernel(%arg0: i32, %arg1: i32, %arg2: memref<16x32xbf16, #tpu.memory_space<vmem>>, %arg3: memref<32x128xbf16, #tpu.memory_space<vmem>>, %arg4: memref<1x128xf32, #tpu.memory_space<vmem>>, %arg5: memref<128x32xbf16, #tpu.memory_space<vmem>>, %arg6: memref<1x32xf32, #tpu.memory_space<vmem>>, %arg7: memref<16x32xf32, #tpu.memory_space<vmem>>, %arg8: memref<16x32xf32, #tpu.memory_space<vmem>>) attributes {dimension_semantics = [#tpu.dimension_semantics<parallel>, #tpu.dimension_semantics<arbitrary>], iteration_bounds = array<i64: 1, 1>, scalar_prefetch = 0 : i64, scratch_operands = 1 : i64, tpu.core_type = #tpu.core_type<tc>, window_params = [{transform_indices = @transform_0, window_bounds = array<i64: 16, 32>}, {transform_indices = @transform_1, window_bounds = array<i64: 32, 128>}, {transform_indices = @transform_2, window_bounds = array<i64: 1, 128>}, {transform_indices = @transform_3, window_bounds = array<i64: 128, 32>}, {pipeline_mode = #tpu.pipeline_mode<synchronous>, transform_indices = @transform_4, window_bounds = array<i64: 1, 32>}, {transform_indices = @transform_5, window_bounds = array<i64: 16, 32>}]} {
    %c0_i32 = arith.constant 0 : i32
    %0 = arith.cmpi eq, %arg1, %c0_i32 : i32
    %1 = arith.extui %0 : i1 to i32
    %c0_i32_0 = arith.constant 0 : i32
    %2 = arith.cmpi ne, %1, %c0_i32_0 : i32
    scf.if %2 {
      %cst_19 = arith.constant 0.000000e+00 : f32
      %31 = vector.broadcast %cst_19 : f32 to vector<16x32xf32>
      %c0_20 = arith.constant 0 : index
      %c0_21 = arith.constant 0 : index
      %32 = vector.load %arg8[%c0_20, %c0_21] : memref<16x32xf32, #tpu.memory_space<vmem>>, vector<16x32xf32>
      tpu.vector_store %arg8[%c0_20, %c0_21], %31 {strides = array<i32>} : memref<16x32xf32, #tpu.memory_space<vmem>>, vector<16x32xf32>,
    } else {
    }
    %c0 = arith.constant 0 : index
    %c0_1 = arith.constant 0 : index
    %3 = vector.load %arg2[%c0, %c0_1] : memref<16x32xbf16, #tpu.memory_space<vmem>>, vector<16x32xbf16>
    %c0_2 = arith.constant 0 : index
    %c0_3 = arith.constant 0 : index
    %4 = vector.load %arg3[%c0_2, %c0_3] : memref<32x128xbf16, #tpu.memory_space<vmem>>, vector<32x128xbf16>
    %cst = arith.constant dense<0.000000e+00> : vector<16x128xf32>
    %5 = tpu.matmul %3, %4, %cst {dimension_numbers = #tpu.dot_dimension_numbers<[1], [0], [0], [1], [0, 0, 1, 1], [], []>} : vector<16x32xbf16>, vector<32x128xbf16>, vector<16x128xf32> -> vector<16x128xf32>
    %c0_4 = arith.constant 0 : index
    %c0_5 = arith.constant 0 : index
    %6 = vector.load %arg4[%c0_4, %c0_5] : memref<1x128xf32, #tpu.memory_space<vmem>>, vector<1x128xf32>
    %7 = vector.broadcast %6 : vector<1x128xf32> to vector<16x128xf32>
    %8 = arith.addf %5, %7 : vector<16x128xf32>
    %cst_6 = arith.constant 5.000000e-01 : f32
    %9 = vector.broadcast %cst_6 : f32 to vector<16x128xf32>
    %10 = arith.mulf %9, %8 : vector<16x128xf32>
    %cst_7 = arith.constant 4.471500e-02 : f32
    %11 = vector.broadcast %cst_7 : f32 to vector<16x128xf32>
    %12 = arith.mulf %11, %8 : vector<16x128xf32>
    %13 = arith.mulf %12, %8 : vector<16x128xf32>
    %14 = arith.mulf %13, %8 : vector<16x128xf32>
    %15 = arith.addf %8, %14 : vector<16x128xf32>
    %cst_8 = arith.constant 0.797884583 : f32
    %16 = vector.broadcast %cst_8 : f32 to vector<16x128xf32>
    %17 = arith.mulf %16, %15 : vector<16x128xf32>
    %18 = math.tanh %17 : vector<16x128xf32>
    %cst_9 = arith.constant 1.000000e+00 : f32
    %19 = vector.broadcast %cst_9 : f32 to vector<16x128xf32>
    %20 = arith.addf %19, %18 : vector<16x128xf32>
    %21 = arith.mulf %10, %20 : vector<16x128xf32>
    %22 = arith.truncf %21 : vector<16x128xf32> to vector<16x128xbf16>
    %c0_10 = arith.constant 0 : index
    %c0_11 = arith.constant 0 : index
    %23 = vector.load %arg8[%c0_10, %c0_11] : memref<16x32xf32, #tpu.memory_space<vmem>>, vector<16x32xf32>
    %c0_12 = arith.constant 0 : index
    %c0_13 = arith.constant 0 : index
    %24 = vector.load %arg5[%c0_12, %c0_13] : memref<128x32xbf16, #tpu.memory_space<vmem>>, vector<128x32xbf16>
    %cst_14 = arith.constant dense<0.000000e+00> : vector<16x32xf32>
    %25 = tpu.matmul %22, %24, %cst_14 {dimension_numbers = #tpu.dot_dimension_numbers<[1], [0], [0], [1], [0, 0, 1, 1], [], []>} : vector<16x128xbf16>, vector<128x32xbf16>, vector<16x32xf32> -> vector<16x32xf32>
    %26 = arith.addf %23, %25 : vector<16x32xf32>
    %c0_15 = arith.constant 0 : index
    %c0_16 = arith.constant 0 : index
    %27 = vector.load %arg8[%c0_15, %c0_16] : memref<16x32xf32, #tpu.memory_space<vmem>>, vector<16x32xf32>
    tpu.vector_store %arg8[%c0_15, %c0_16], %26 {strides = array<i32>} : memref<16x32xf32, #tpu.memory_space<vmem>>, vector<16x32xf32>,
    %c0_i32_17 = arith.constant 0 : i32
    %28 = arith.cmpi eq, %arg1, %c0_i32_17 : i32
    %29 = arith.extui %28 : i1 to i32
    %c0_i32_18 = arith.constant 0 : i32
    %30 = arith.cmpi ne, %29, %c0_i32_18 : i32
    scf.if %30 {
      %c0_19 = arith.constant 0 : index
      %c0_20 = arith.constant 0 : index
      %31 = vector.load %arg8[%c0_19, %c0_20] : memref<16x32xf32, #tpu.memory_space<vmem>>, vector<16x32xf32>
      %c0_21 = arith.constant 0 : index
      %c0_22 = arith.constant 0 : index
      %32 = vector.load %arg6[%c0_21, %c0_22] : memref<1x32xf32, #tpu.memory_space<vmem>>, vector<1x32xf32>
      %33 = vector.broadcast %32 : vector<1x32xf32> to vector<16x32xf32>
      %34 = arith.addf %31, %33 : vector<16x32xf32>
      %c0_23 = arith.constant 0 : index
      %c0_24 = arith.constant 0 : index
      %35 = vector.load %arg7[%c0_23, %c0_24] : memref<16x32xf32, #tpu.memory_space<vmem>>, vector<16x32xf32>
      tpu.vector_store %arg7[%c0_23, %c0_24], %34 {strides = array<i32>} : memref<16x32xf32, #tpu.memory_space<vmem>>, vector<16x32xf32>,
    } else {
    }
    return
  }
  func.func @transform_0(%arg0: i32, %arg1: i32) -> (i32, i32) {
    %c0_i32 = arith.constant 0 : i32
    %c0_i32_0 = arith.constant 0 : i32
    return %arg0, %c0_i32 : i32, i32
  }
  func.func @transform_1(%arg0: i32, %arg1: i32) -> (i32, i32) {
    %c0_i32 = arith.constant 0 : i32
    %c0_i32_0 = arith.constant 0 : i32
    return %c0_i32, %arg1 : i32, i32
  }
  func.func @transform_2(%arg0: i32, %arg1: i32) -> (i32, i32) {
    %c0_i32 = arith.constant 0 : i32
    %c0_i32_0 = arith.constant 0 : i32
    return %c0_i32, %arg1 : i32, i32
  }
  func.func @transform_3(%arg0: i32, %arg1: i32) -> (i32, i32) {
    %c0_i32 = arith.constant 0 : i32
    %c0_i32_0 = arith.constant 0 : i32
    return %arg1, %c0_i32 : i32, i32
  }
  func.func @transform_4(%arg0: i32, %arg1: i32) -> (i32, i32) {
    %c0_i32 = arith.constant 0 : i32
    %c0_i32_0 = arith.constant 0 : i32
    %c0_i32_1 = arith.constant 0 : i32
    return %c0_i32, %c0_i32_0 : i32, i32
  }
  func.func @transform_5(%arg0: i32, %arg1: i32) -> (i32, i32) {
    %c0_i32 = arith.constant 0 : i32
    %c0_i32_0 = arith.constant 0 : i32
    return %arg0, %c0_i32 : i32, i32
  }
}

</mosaic_0001>

<llo_original>
// kernel: tpu_custom_call.1
$region0: #{tpu_custom_call.1}
  #allocation0 [shape = 'u32[]', space=smem, size = 0x4, offset = 0x4, fixed_abs, tag = 'smem constant byte address 0x4 - core index']
  #allocation1 [shape = 'u32[72,128]{1,0:T(1,128)}', space=vmem, size = 0x9000, scoped, tag = 'internal scratch']
  #allocation2 [shape = 'f32[16,32]{1,0:T(8,128)}', space=vmem, size = 0x2000, scoped, tag = 'scratch operand']
  %s0 = inlined_call_operand.vmem [shape: bf16[16,32], index: 0, kind: input, shape index: {}]
  %s1 = inlined_call_operand.vmem [shape: bf16[32,128], index: 1, kind: input, shape index: {}]
  %s2 = inlined_call_operand.vmem [shape: f32[1,128], index: 2, kind: input, shape index: {}]
  %s3 = inlined_call_operand.vmem [shape: bf16[128,32], index: 3, kind: input, shape index: {}]
  %s4 = inlined_call_operand.vmem [shape: f32[1,32], index: 4, kind: input, shape index: {}]
  %s5 = inlined_call_operand.hbm [shape: f32[16,32], index: 5, kind: output, shape index: {}]
  %s6 = sld [smem:[#allocation0]]
  $region38: #{tpu_custom_call.1} parent=0
    _
  %s8 = ssub.s32 1, %s6
  %s9 = scalar_select 0, %s8, %s6
  $region1: #{tpu_custom_call.1} parent=0
    #allocation3 [shape = 'u8[8192]{0}', space=vmem, size = 0x2000, scoped, tag = 'output window, operand 0, single buffered']
    #allocation4 [shape = 's32[1]{0}', space=sflag, size = 0x4, scoped, tag = 'scoped memory for tpu_custom_call.1']
    %10 = vsyncpa [#allocation4], 0
    // Predicated region
    $region2: #{tpu_custom_call.1} parent=1 // pred_check
      _
    $region3: #{tpu_custom_call.1} parent=1 // pred_check_branch
      %12 = sbr.rel (0) target = $region5
    $region4: #{tpu_custom_call.1} parent=1 // pred_region
      _
    $region5: #{tpu_custom_call.1} parent=1 // pred_fallthru
      _
    // Predicated region
    $region6: #{tpu_custom_call.1} parent=1 // pred_check
      _
    $region7: #{tpu_custom_call.1} parent=1 // pred_check_branch
      %14 = sbr.rel (0) target = $region9
    $region8: #{tpu_custom_call.1} parent=1 // pred_region
      _
    $region9: #{tpu_custom_call.1} parent=1 // pred_fallthru
      _
    // Predicated region
    $region10: #{tpu_custom_call.1} parent=1 // pred_check
      _
    $region11: #{tpu_custom_call.1} parent=1 // pred_check_branch
      %16 = sbr.rel (0) target = $region13
    $region12: #{tpu_custom_call.1} parent=1 // pred_region
      _
    $region13: #{tpu_custom_call.1} parent=1 // pred_fallthru
      _
    // Predicated region
    $region14: #{tpu_custom_call.1} parent=1 // pred_check
      _
    $region15: #{tpu_custom_call.1} parent=1 // pred_check_branch
      %18 = sbr.rel (0) target = $region17
    $region16: #{tpu_custom_call.1} parent=1 // pred_region
      _
    $region17: #{tpu_custom_call.1} parent=1 // pred_fallthru
      _
    // Predicated region
    $region18: #{tpu_custom_call.1} parent=1 // pred_check
      _
    $region19: #{tpu_custom_call.1} parent=1 // pred_check_branch
      %20 = sbr.rel (0) target = $region21
    $region20: #{tpu_custom_call.1} parent=1 // pred_region
      _
    $region21: #{tpu_custom_call.1} parent=1 // pred_fallthru
      _
    %p22 = scmp.eq.s32.totalorder 0, 0
    // Predicated region
    $region22: #{tpu_custom_call.1} parent=1 // pred_check
      %p23 = pneg %p22
    $region23: #{tpu_custom_call.1} parent=1 // pred_check_branch
      %25 = sbr.rel (%p23) target = $region25
    $region24: #{tpu_custom_call.1} parent=1 // pred_region
      %vm26 = vcmask 261120
      %27 = vst.msk [vmem:[#allocation2] sm:$0xff] %vm26, 0.0
      %28 = vst.msk [vmem:[#allocation2 + $0x8] sm:$0xff] %vm26, 0.0
    $region25: #{tpu_custom_call.1} parent=1 // pred_fallthru
      _
    %v29 = vld [vmem:[%s0] sm:$0xf]
    %v30 = vld [vmem:[%s0 + $0x4] sm:$0xf]
    %v31 = vld [vmem:[%s1] sm:$0xf]
    %v32 = vld [vmem:[%s1 + $0x4] sm:$0xf]
    %v33 = vld [vmem:[%s1 + $0x8] sm:$0xf]
    %v34 = vld [vmem:[%s1 + $0xc] sm:$0xf]
    %v35 = vld [vmem:[%s2] sm:$0x1]
    %v37 = vperm.slane %v35, 0
    %v41 = vunpack.c.l.b16 %v29
    %v42 = vunpack.c.l.b16 %v30
    %v43 = vpack.c.b16 %v42, %v41
    %v48 = vunpack.c.l.b16 %v31
    %v49 = vunpack.c.l.b16 %v32
    %v50 = vunpack.c.l.b16 %v33
    %v51 = vunpack.c.l.b16 %v34
    %v52 = vpack.c.b16 %v49, %v48
    %v53 = vpack.c.b16 %v51, %v50
    %vm56 = vcmask 261120
    %v58 = vsel %vm56, %v43, 0
    %60 = vmatpush.bf16.msra.mxu0 0
    %61 = vmatpush.bf16.msra.mxu0 0
    %62 = vmatpush.bf16.msra.mxu0 0
    %63 = vmatpush.bf16.msra.mxu0 0
    %64 = vmatpush.bf16.msra.mxu0 0
    %65 = vmatpush.bf16.msra.mxu0 0
    %66 = vmatpush.bf16.msra.mxu0 %v53
    %67 = vmatpush.bf16.msra.mxu0 %v52
    %68 = vmatmul.bf16.gmra.mxu0 %v58
    %v69 = vpop.f32.mrf.mxu0
    %v70 = vadd.f32 %v37, %v69
    %v71 = vpop.f32.mrf.mxu0
    %v72 = vadd.f32 %v37, %v71
    %73 = vdwg.mxu0
    %v74 = vmul.f32 %v70, 0.5
    %v75 = vmul.f32 %v72, 0.5
    %v76 = vmul.f32 %v70, 0.044715
    %v77 = vmul.f32 %v72, 0.044715
    %v78 = vmul.f32 %v76, %v70
    %v79 = vmul.f32 %v77, %v72
    %v80 = vmul.f32 %v78, %v70
    %v81 = vmul.f32 %v79, %v72
    %v82 = vadd.f32 %v70, %v80
    %v83 = vadd.f32 %v72, %v81
    %v84 = vmul.f32 %v82, 0.7978846
    %v85 = vmul.f32 %v83, 0.7978846
    %v86 = vtanh.pop %v84
    %v87 = vtanh.pop %v85
    %v88 = vadd.f32 %v86, 1.0
    %v89 = vadd.f32 %v87, 1.0
    %v90 = vmul.f32 %v74, %v88
    %v91 = vmul.f32 %v75, %v89
    %v92 = vpack.c.bf16 %v91, %v90
    %v93 = vld [vmem:[#allocation2] sm:$0xff]
    %v94 = vld [vmem:[#allocation2 + $0x8] sm:$0xff]
    %v95 = vld [vmem:[%s3] sm:$0xf]
    %v96 = vld [vmem:[%s3 + $0x4] sm:$0xf]
    %v97 = vld [vmem:[%s3 + $0x8] sm:$0xf]
    %v98 = vld [vmem:[%s3 + $0xc] sm:$0xf]
    %v99 = vld [vmem:[%s3 + $0x10] sm:$0xf]
    %v100 = vld [vmem:[%s3 + $0x14] sm:$0xf]
    %v101 = vld [vmem:[%s3 + $0x18] sm:$0xf]
    %v102 = vld [vmem:[%s3 + $0x1c] sm:$0xf]
    %v103 = vld [vmem:[%s3 + $0x20] sm:$0xf]
    %v104 = vld [vmem:[%s3 + $0x24] sm:$0xf]
    %v105 = vld [vmem:[%s3 + $0x28] sm:$0xf]
    %v106 = vld [vmem:[%s3 + $0x2c] sm:$0xf]
    %v107 = vld [vmem:[%s3 + $0x30] sm:$0xf]
    %v108 = vld [vmem:[%s3 + $0x34] sm:$0xf]
    %v109 = vld [vmem:[%s3 + $0x38] sm:$0xf]
    %v110 = vld [vmem:[%s3 + $0x3c] sm:$0xf]
    %v127 = vunpack.c.l.b16 %v95
    %v128 = vunpack.c.l.b16 %v96
    %v129 = vunpack.c.l.b16 %v97
    %v130 = vunpack.c.l.b16 %v98
    %v131 = vunpack.c.l.b16 %v99
    %v132 = vunpack.c.l.b16 %v100
    %v133 = vunpack.c.l.b16 %v101
    %v134 = vunpack.c.l.b16 %v102
    %v135 = vunpack.c.l.b16 %v103
    %v136 = vunpack.c.l.b16 %v104
    %v137 = vunpack.c.l.b16 %v105
    %v138 = vunpack.c.l.b16 %v106
    %v139 = vunpack.c.l.b16 %v107
    %v140 = vunpack.c.l.b16 %v108
    %v141 = vunpack.c.l.b16 %v109
    %v142 = vunpack.c.l.b16 %v110
    %v143 = vpack.c.b16 %v128, %v127
    %v144 = vpack.c.b16 %v130, %v129
    %v145 = vpack.c.b16 %v132, %v131
    %v146 = vpack.c.b16 %v134, %v133
    %v147 = vpack.c.b16 %v136, %v135
    %v148 = vpack.c.b16 %v138, %v137
    %v149 = vpack.c.b16 %v140, %v139
    %v150 = vpack.c.b16 %v142, %v141
    %159 = vmatpush.bf16.msra.mxu0 %v150
    %160 = vmatpush.bf16.msra.mxu0 %v149
    %161 = vmatpush.bf16.msra.mxu0 %v148
    %162 = vmatpush.bf16.msra.mxu0 %v147
    %163 = vmatpush.bf16.msra.mxu0 %v146
    %164 = vmatpush.bf16.msra.mxu0 %v145
    %165 = vmatpush.bf16.msra.mxu0 %v144
    %166 = vmatpush.bf16.msra.mxu0 %v143
    %167 = vmatmul.bf16.gmra.mxu0 %v92
    %v168 = vpop.f32.mrf.mxu0
    %v169 = vadd.f32 0.0, %v168
    %v170 = vpop.f32.mrf.mxu0
    %v171 = vadd.f32 0.0, %v170
    %172 = vdwg.mxu0
    %v173 = vadd.f32 %v93, %v169
    %v174 = vadd.f32 %v94, %v171
    %175 = vst.msk [vmem:[#allocation2] sm:$0xff] %vm56, %v173
    %176 = vst.msk [vmem:[#allocation2 + $0x8] sm:$0xff] %vm56, %v174
    // Predicated region
    $region26: #{tpu_custom_call.1} parent=1 // pred_check
      %p177 = pneg %p22
    $region27: #{tpu_custom_call.1} parent=1 // pred_check_branch
      %179 = sbr.rel (%p177) target = $region29
    $region28: #{tpu_custom_call.1} parent=1 // pred_region
      %v180 = vld [vmem:[#allocation2] sm:$0xff]
      %v181 = vld [vmem:[#allocation2 + $0x8] sm:$0xff]
      %v182 = vld [vmem:[%s4] sm:$0x1]
      %v184 = vperm.slane %v182, 0
      %v186 = vadd.f32 %v180, %v184
      %v187 = vadd.f32 %v181, %v184
      %188 = vst.msk [vmem:[#allocation3] sm:$0xff] %vm56, %v186
      %189 = vst.msk [vmem:[#allocation3 + $0x8] sm:$0xff] %vm56, %v187
    $region29: #{tpu_custom_call.1} parent=1 // pred_fallthru
      _
    // Predicated region
    $region30: #{tpu_custom_call.1} parent=1 // pred_check
      _
    $region31: #{tpu_custom_call.1} parent=1 // pred_check_branch
      %191 = sbr.rel (0) target = $region33
    $region32: #{tpu_custom_call.1} parent=1 // pred_region
      %193 = vsyncadd [#allocation4], 0
      %s194 = sshll.u32 [#allocation3], 4
      %s195 = int_to_ptr.vmem [resolvable:$true] %s194
      %s196 = sshll.u32 %s5, 4
      %s197 = int_to_ptr.hbm [resolvable:$true] %s196
      %202 = dma.vmem_to_hbm [thread:$0]  %s195, 256, %s197, [#allocation4], 128, 128, 8
    $region33: #{tpu_custom_call.1} parent=1 // pred_fallthru
      _
    // Predicated region
    $region34: #{tpu_custom_call.1} parent=1 // pred_check
      _
    $region35: #{tpu_custom_call.1} parent=1 // pred_check_branch
      %204 = sbr.rel (0) target = $region37
    $region36: #{tpu_custom_call.1} parent=1 // pred_region
      %206 = dma.done [#allocation4], 256
    $region37: #{tpu_custom_call.1} parent=1 // pred_fallthru
      _
    %207 = vsyncpa [#allocation4], 1

</llo_original>
